<compile_context>
chip_gen: v5e
topology: v5e:2x2
jax: 0.10.0
libtpu: 0.0.40
codegen_flags: <defaults>
</compile_context>

<pallas_src>
import jax
import jax.numpy as jnp
from jax.experimental import pallas as pl
from jax.experimental.pallas import tpu as pltpu


def _copy_kernel(x_ref, o_ref):
    # Pure pass-through copy: identical block shapes => no relayout, just DMA.
    o_ref[...] = x_ref[...]


def _chip_config():
    """Returns (tile_bytes, vmem_limit_bytes_or_None, dual_core) per TPU gen."""
    kind = ""
    try:
        kind = jax.devices()[0].device_kind.lower().replace(" ", "")
    except Exception:
        pass
    if "v7" in kind or "tpu7" in kind:
        # 4 buffers x 8 MiB = 32 MiB; needs scoped-VMEM limit raised above the
        # 32 MiB default (64 MiB physical per TC).
        return 8 * 1024 * 1024, 48 * 1024 * 1024, True
    if "v6" in kind or "tpu6" in kind:
        # 4 buffers x 4 MiB = 16 MiB fits the 32 MiB default with headroom.
        return 4 * 1024 * 1024, None, False
    # v5e / unknown: 16 MiB default scoped VMEM -> conservative 2 MiB tiles.
    return 2 * 1024 * 1024, None, False


def unravel(x: jax.Array, *, donate: bool = False) -> jax.Array:
    """Pallas implementation of Unravel.forward: (B, C, L) -> (B, 2C, L//2)."""
    B, C, L = x.shape
    assert L % 2 == 0, "last dim must be even"
    out_3d = (B, 2 * C, L // 2)
    total = B * C * L
    itemsize = jnp.dtype(x.dtype).itemsize

    # Present the flat buffer as a lane-dense 2D slab (wrapper reshape is free).
    lanes = next((w for w in (512, 256, 128) if total % w == 0), None)
    if lanes is None:
        # Odd total: the kernel would need masked sub-128-lane stores, and the
        # op is a contiguous row-major reshape anyway -> metadata-only, 0 bytes
        # of HBM traffic. Fastest possible implementation is no kernel at all.
        return x.reshape(out_3d)

    rows = total // lanes
    slab = x.reshape(rows, lanes)

    tile_bytes, vmem_limit, dual_core = _chip_config()

    # Sub-32-bit dtypes pack along sublanes (bf16 vreg holds [16,128]); round
    # the row tile to the packed sublane count: 8 f32, 16 bf16, 32 int8/fp8.
    sub_mult = max(8, 8 * (4 // max(1, itemsize)))

    target_rows = max(sub_mult, tile_bytes // (lanes * itemsize))
    r_tile = min(rows, target_rows)
    if dual_core and rows > 4 * sub_mult:
        # Keep >= ~4 grid steps so CORE_PARALLEL feeds both TensorCores.
        quarter = -(-rows // 4)
        quarter = -(-quarter // sub_mult) * sub_mult
        r_tile = min(r_tile, quarter)
    if r_tile != rows:
        r_tile = max(sub_mult, (r_tile // sub_mult) * sub_mult)
        r_tile = min(r_tile, rows)  # full-extent block is always legal
    grid = (pl.cdiv(rows, r_tile),)

    dims = (pltpu.CORE_PARALLEL,) if dual_core else ("parallel",)
    cp_kwargs = dict(dimension_semantics=dims)
    if vmem_limit is not None:
        cp_kwargs["vmem_limit_bytes"] = vmem_limit

    call_kwargs = {}
    if donate:
        # Output is bit-identical to the input; aliasing halves peak HBM
        # footprint when the caller can donate x.
        call_kwargs["input_output_aliases"] = {0: 0}

    out_slab = pl.pallas_call(
        _copy_kernel,
        out_shape=jax.ShapeDtypeStruct((rows, lanes), x.dtype),
        grid=grid,
        in_specs=[pl.BlockSpec((r_tile, lanes), lambda i: (i, 0))],
        out_specs=pl.BlockSpec((r_tile, lanes), lambda i: (i, 0)),
        compiler_params=pltpu.CompilerParams(**cp_kwargs),
        cost_estimate=pl.CostEstimate(
            flops=0, transcendentals=0, bytes_accessed=2 * total * itemsize
        ),
        **call_kwargs,
    )(slab)

    # Free metadata-only reshape back to the module's output shape.
    return out_slab.reshape(out_3d)


if __name__ == "__main__":
    key = jax.random.PRNGKey(0)

    # Small shape consistent with the module's forward: (B, C, L)
    B, C, L = 2, 4, 16
    x = jax.random.normal(key, (B, C, L), dtype=jnp.float32)
    out = jax.block_until_ready(unravel(x))
    ref = x.reshape(B, 2 * C, L // 2)
    assert out.shape == (B, 2 * C, L // 2), out.shape
    assert out.dtype == x.dtype
    assert jnp.array_equal(out, ref), "mismatch vs reference reshape"

    # 512-lane slab path, f32.
    B2, C2, L2 = 2, 8, 256
    x2 = jax.random.normal(jax.random.PRNGKey(1), (B2, C2, L2), dtype=jnp.float32)
    out2 = jax.block_until_ready(unravel(x2))
    assert jnp.array_equal(out2, x2.reshape(B2, 2 * C2, L2 // 2))

    # bf16 exercises the dtype-aware sublane rounding.
    x2b = x2.astype(jnp.bfloat16)
    out2b = jax.block_until_ready(unravel(x2b))
    assert jnp.array_equal(out2b, x2b.reshape(B2, 2 * C2, L2 // 2))

    # Odd shape: short-circuits to the metadata-only reshape (no kernel).
    B3, C3, L3 = 2, 3, 10
    x3 = jax.random.normal(jax.random.PRNGKey(2), (B3, C3, L3), dtype=jnp.float32)
    out3 = jax.block_until_ready(unravel(x3))
    assert jnp.array_equal(out3, x3.reshape(B3, 2 * C3, L3 // 2))

    # Medium shape exercising a multi-step grid.
    B4, C4, L4 = 8, 128, 1024
    x4 = jax.random.normal(jax.random.PRNGKey(3), (B4, C4, L4), dtype=jnp.float32)
    out4 = jax.block_until_ready(unravel(x4))
    assert jnp.array_equal(out4, x4.reshape(B4, 2 * C4, L4 // 2))

    print("KERNEL_OK")
</pallas_src>

<mosaic_0001>
module attributes {stable_mosaic.version = 11 : i64} {
  func.func @_copy_kernel(%arg0: i32, %arg1: memref<1x128xf32, #tpu.memory_space<vmem>>, %arg2: memref<1x128xf32, #tpu.memory_space<vmem>>) attributes {dimension_semantics = [#tpu.dimension_semantics<parallel>], iteration_bounds = array<i64: 1>, scalar_prefetch = 0 : i64, scratch_operands = 0 : i64, tpu.core_type = #tpu.core_type<tc>, window_params = [{transform_indices = @transform_0, window_bounds = array<i64: 1, 128>}, {transform_indices = @transform_1, window_bounds = array<i64: 1, 128>}]} {
    %c0 = arith.constant 0 : index
    %c0_0 = arith.constant 0 : index
    %0 = vector.load %arg1[%c0, %c0_0] : memref<1x128xf32, #tpu.memory_space<vmem>>, vector<1x128xf32>
    %c0_1 = arith.constant 0 : index
    %c0_2 = arith.constant 0 : index
    %1 = vector.load %arg2[%c0_1, %c0_2] : memref<1x128xf32, #tpu.memory_space<vmem>>, vector<1x128xf32>
    tpu.vector_store %arg2[%c0_1, %c0_2], %0 {strides = array<i32>} : memref<1x128xf32, #tpu.memory_space<vmem>>, vector<1x128xf32>,
    return
  }
  func.func @transform_0(%arg0: i32) -> (i32, i32) {
    %c0_i32 = arith.constant 0 : i32
    %c0_i32_0 = arith.constant 0 : i32
    return %arg0, %c0_i32 : i32, i32
  }
  func.func @transform_1(%arg0: i32) -> (i32, i32) {
    %c0_i32 = arith.constant 0 : i32
    %c0_i32_0 = arith.constant 0 : i32
    return %arg0, %c0_i32 : i32, i32
  }
}

</mosaic_0001>

<llo_original>
// kernel: tpu_custom_call.1
$region0: #{tpu_custom_call.1}
  #allocation0 [shape = 'u32[]', space=smem, size = 0x4, offset = 0x4, fixed_abs, tag = 'smem constant byte address 0x4 - core index']
  #allocation1 [shape = 'u32[72,128]{1,0:T(1,128)}', space=vmem, size = 0x9000, scoped, tag = 'internal scratch']
  %s0 = inlined_call_operand.hbm [shape: f32[1,128], index: 0, kind: input, shape index: {}]
  %s1 = inlined_call_operand.hbm [shape: f32[1,128], index: 1, kind: output, shape index: {}]
  %s2 = sld [smem:[#allocation0]]
  $region18: #{tpu_custom_call.1} parent=0
    _
  %s4 = ssub.s32 1, %s2
  %s5 = scalar_select 0, %s4, %s2
  $region1: #{tpu_custom_call.1} parent=0
    #allocation2 [shape = 'u8[512]{0}', space=vmem, size = 0x400, scoped, tag = 'input window, operand 0, single buffered']
    #allocation3 [shape = 's32[1]{0}', space=sflag, size = 0x4, scoped, tag = 'scoped memory for tpu_custom_call.1']
    #allocation4 [shape = 's32[1]{0}', space=sflag, size = 0x4, scoped, tag = 'scoped memory for tpu_custom_call.1']
    #allocation5 [shape = 'u8[512]{0}', space=vmem, size = 0x400, scoped, tag = 'output window, operand 0, single buffered']
    %6 = vsyncpa [#allocation3], 0
    %7 = vsyncpa [#allocation4], 0
    // Predicated region
    $region2: #{tpu_custom_call.1} parent=1 // pred_check
      _
    $region3: #{tpu_custom_call.1} parent=1 // pred_check_branch
      %9 = sbr.rel (0) target = $region5
    $region4: #{tpu_custom_call.1} parent=1 // pred_region
      %11 = vsyncadd [#allocation3], 0
      %s13 = sshll.u32 %s0, 4
      %s14 = int_to_ptr.hbm [resolvable:$true] %s13
      %s15 = sshll.u32 [#allocation2], 4
      %s16 = int_to_ptr.vmem [resolvable:$true] %s15
      %18 = dma.hbm_to_vmem [thread:$0]  %s14, 16, %s16, [#allocation3]
    $region5: #{tpu_custom_call.1} parent=1 // pred_fallthru
      _
    // Predicated region
    $region6: #{tpu_custom_call.1} parent=1 // pred_check
      _
    $region7: #{tpu_custom_call.1} parent=1 // pred_check_branch
      %20 = sbr.rel (0) target = $region9
    $region8: #{tpu_custom_call.1} parent=1 // pred_region
      %22 = dma.done [#allocation3], 16
    $region9: #{tpu_custom_call.1} parent=1 // pred_fallthru
      _
    %v23 = vld [vmem:[#allocation2] sm:$0x1]
    %24 = vst [vmem:[#allocation5] sm:$0x1] %v23
    // Predicated region
    $region10: #{tpu_custom_call.1} parent=1 // pred_check
      _
    $region11: #{tpu_custom_call.1} parent=1 // pred_check_branch
      %26 = sbr.rel (0) target = $region13
    $region12: #{tpu_custom_call.1} parent=1 // pred_region
      %28 = vsyncadd [#allocation4], 0
      %s30 = sshll.u32 [#allocation5], 4
      %s31 = int_to_ptr.vmem [resolvable:$true] %s30
      %s32 = sshll.u32 %s1, 4
      %s33 = int_to_ptr.hbm [resolvable:$true] %s32
      %35 = dma.vmem_to_hbm [thread:$0]  %s31, 16, %s33, [#allocation4]
    $region13: #{tpu_custom_call.1} parent=1 // pred_fallthru
      _
    // Predicated region
    $region14: #{tpu_custom_call.1} parent=1 // pred_check
      _
    $region15: #{tpu_custom_call.1} parent=1 // pred_check_branch
      %37 = sbr.rel (0) target = $region17
    $region16: #{tpu_custom_call.1} parent=1 // pred_region
      %39 = dma.done [#allocation4], 16
    $region17: #{tpu_custom_call.1} parent=1 // pred_fallthru
      _
    %40 = vsyncpa [#allocation3], 1
    %41 = vsyncpa [#allocation4], 1

</llo_original>
